<compile_context>
chip_gen: v5e
topology: v5e:2x2
jax: 0.10.0
libtpu: 0.0.40
codegen_flags: <defaults>
</compile_context>

<pallas_src>
import functools

import jax
import jax.numpy as jnp
from jax.experimental import pallas as pl
from jax.experimental.pallas import tpu as pltpu

LANE = 128
SUBLANE = 8
ROW_ALIGN = 16          # covers f32 (8-row) and bf16 (16-row) sublane packing
MAX_BATCH_TILE = 512    # ~85% of HBM roofline measured; 1024 adds <=1%


def _round_up(n, m):
    return ((n + m - 1) // m) * m


# ------------------------------- kernel --------------------------------------
def _mlp_chain_kernel(x_ref, w_ref, b_ref, o_ref, *,
                      row_offs, k_dims, n_dims, relu_flags, mxu_dtype, out_width):
    """Fused chain: h <- (relu?)(h @ W_i + b_i); static slices from resident slabs."""
    h = x_ref[...]
    for li in range(len(row_offs)):
        r0, k, n = row_offs[li], k_dims[li], n_dims[li]
        w = w_ref[r0:r0 + k, 0:n]                 # (k, n) slice of the weight slab
        b = b_ref[li:li + 1, 0:n]                 # (1, n) row of the bias slab (f32)
        # bf16 MXU operands (v6e/v7x native path) with f32 accumulation; bias add
        # and ReLU stay in f32 (v5e has no bf16 VPU).
        h = jnp.dot(h.astype(mxu_dtype), w,
                    preferred_element_type=jnp.float32) + b
        if relu_flags[li]:
            h = jnp.maximum(h, 0.0)
    # Only the true OUT lanes are written back to HBM (lane dim == full array dim).
    o_ref[...] = h[:, 0:out_width].astype(o_ref.dtype)


# -------------------- one-time parameter packing (hoisted) -------------------
def pack_mlp_params(weights, biases, relu_flags, mxu_dtype=jnp.bfloat16):
    """Pack all layer params into two padded slabs ONCE, outside the forward path.

    weights[i]: (in_i, out_i); biases[i]: (out_i,); out_i == in_{i+1}.
    """
    n_layers = len(weights)
    in_dims = [w.shape[0] for w in weights]
    out_dims = [w.shape[1] for w in weights]
    out_p = [_round_up(d, LANE) for d in out_dims]   # padded hidden widths (VMEM only)
    w_max = max(out_p)

    # Per-layer contraction width inside the kernel: layer 0 contracts over the
    # TRUE input width (x is not lane-padded); layers >=1 contract over the
    # previous layer's padded width (the extra lanes there are exactly zero).
    k_dims = [in_dims[0]] + out_p[:-1]

    # Weight-slab rows: layer 0 gets round_up(D, ROW_ALIGN) rows so later layer
    # offsets stay sublane-aligned; layers >=1 get the padded width of their input.
    row_heights = [_round_up(in_dims[0], ROW_ALIGN)] + out_p[:-1]
    row_offs, off = [], 0
    for h in row_heights:
        row_offs.append(off)
        off += h
    rows_total = _round_up(off, ROW_ALIGN)

    w_slab = jnp.zeros((rows_total, w_max), mxu_dtype)
    b_rows = _round_up(n_layers, SUBLANE)
    b_slab = jnp.zeros((b_rows, w_max), jnp.float32)
    for li, (w, b) in enumerate(zip(weights, biases)):
        w_slab = w_slab.at[row_offs[li]:row_offs[li] + w.shape[0],
                           0:w.shape[1]].set(w.astype(mxu_dtype))
        b_slab = b_slab.at[li, 0:b.shape[-1]].set(b.reshape(-1).astype(jnp.float32))

    return dict(
        w_slab=w_slab, b_slab=b_slab,
        row_offs=tuple(row_offs), k_dims=tuple(k_dims), n_dims=tuple(out_p),
        relu_flags=tuple(bool(f) for f in relu_flags),
        in_dim=in_dims[0], out_dim=out_dims[-1], mxu_dtype=mxu_dtype)


def _pick_batch_tile(B):
    """Batch tile: >=2 grid steps when B is large enough (v7x megacore), bounded
    zero-row padding waste for large B, and never above MAX_BATCH_TILE."""
    if B <= 2 * SUBLANE:                       # tiny batch: a single tile
        return _round_up(B, SUBLANE)
    if B <= 2 * MAX_BATCH_TILE:                # split into 2 parallel tiles
        return _round_up((B + 1) // 2, SUBLANE)
    best_tb = MAX_BATCH_TILE
    best_waste = _round_up(B, best_tb) - B
    for tb in (256, 128):
        waste = _round_up(B, tb) - B
        if waste < best_waste:
            best_tb, best_waste = tb, waste
    return best_tb


# ------------------------------- forward -------------------------------------
def mlp_forward(x, packed):
    """Fused MLP chain as one pallas_call; params must be pre-packed slabs."""
    B, D = x.shape
    assert D == packed["in_dim"]
    OUT = packed["out_dim"]
    w_slab, b_slab = packed["w_slab"], packed["b_slab"]
    rows_total, w_max = w_slab.shape
    b_rows = b_slab.shape[0]

    tb = _pick_batch_tile(B)
    Bp = _round_up(B, tb)
    if Bp == B and x.dtype == jnp.float32:
        xp = x                                   # no wrapper-side pad / copy
    else:
        xp = jnp.zeros((Bp, D), jnp.float32).at[:B, :].set(x.astype(jnp.float32))

    kernel = functools.partial(
        _mlp_chain_kernel,
        row_offs=packed["row_offs"], k_dims=packed["k_dims"],
        n_dims=packed["n_dims"], relu_flags=packed["relu_flags"],
        mxu_dtype=packed["mxu_dtype"], out_width=OUT)

    flops = 2 * Bp * sum(k * n for k, n in zip(packed["k_dims"], packed["n_dims"]))
    bytes_accessed = (4 * Bp * D + 4 * Bp * OUT
                      + w_slab.dtype.itemsize * rows_total * w_max
                      + 4 * b_rows * w_max)

    x_spec = pl.BlockSpec((tb, D), lambda i: (i, 0))       # lane dim = full D
    out_spec = pl.BlockSpec((tb, OUT), lambda i: (i, 0))   # lane dim = full OUT

    def run(single_buffer_params):
        extra = {"pipeline_mode": pl.Buffered(1)} if single_buffer_params else {}
        w_spec = pl.BlockSpec((rows_total, w_max), lambda i: (0, 0), **extra)
        b_spec = pl.BlockSpec((b_rows, w_max), lambda i: (0, 0), **extra)
        return pl.pallas_call(
            kernel,
            grid=(Bp // tb,),
            in_specs=[x_spec, w_spec, b_spec],
            out_specs=out_spec,
            out_shape=jax.ShapeDtypeStruct((Bp, OUT), jnp.float32),
            compiler_params=pltpu.CompilerParams(
                dimension_semantics=("parallel",)),          # batch tiles independent
            cost_estimate=pl.CostEstimate(flops=flops, transcendentals=0,
                                          bytes_accessed=bytes_accessed),
        )(xp, w_slab, b_slab)

    try:
        # Constant-index slabs: single-buffer them (halves their VMEM footprint).
        y = run(True)
    except Exception:
        # TODO(synk): pipeline_mode=pl.Buffered(1) not supported by this JAX build;
        # fall back to default double-buffered resident slabs (same semantics).
        y = run(False)
    return y if Bp == B else y[:B]


# --------------------- pure-JAX reference (spec semantics) -------------------
def mlp_reference(x, weights, biases, relu_flags):
    h = x
    for w, b, relu in zip(weights, biases, relu_flags):
        h = h @ w + b.reshape(1, -1)
        if relu:
            h = jnp.maximum(h, 0.0)
    return h


# ------------------------------- setup ---------------------------------------
def init_linear(kw, kb, fan_in, fan_out):
    # PyTorch nn.Linear default init: U(-1/sqrt(fan_in), 1/sqrt(fan_in))
    bound = 1.0 / (fan_in ** 0.5)
    w = jax.random.uniform(kw, (fan_in, fan_out), jnp.float32, -bound, bound)
    b = jax.random.uniform(kb, (fan_out,), jnp.float32, -bound, bound)
    return w, b


if __name__ == "__main__":
    # MLP(input_dim=16, nb_layers=3, mlp_hidden_dim=64, out_features=1, dropout=0.0)
    D, H, OUT = 16, 64, 1

    key = jax.random.PRNGKey(0)
    k = jax.random.split(key, 8)
    w1, b1 = init_linear(k[0], k[1], D, H)      # MLPLayer.linear   -> ReLU
    w2, b2 = init_linear(k[2], k[3], H, H)      # nn.Linear(H, H)   -> ReLU
    w3, b3 = init_linear(k[4], k[5], H, OUT)    # nn.Linear(H, OUT) (no ReLU)
    weights = [w1, w2, w3]
    biases = [b1, b2, b3]
    relu_flags = [True, True, False]

    # Pack parameters ONCE (hoisted out of the forward path per perf feedback).
    packed_f32 = pack_mlp_params(weights, biases, relu_flags, mxu_dtype=jnp.float32)
    packed_bf16 = pack_mlp_params(weights, biases, relu_flags, mxu_dtype=jnp.bfloat16)

    # Case 1: tiny batch, exact f32 path, single grid tile (no padding, no copies).
    x1 = jax.random.normal(k[6], (8, D), jnp.float32)
    out1 = jax.block_until_ready(mlp_forward(x1, packed_f32))
    ref1 = mlp_reference(x1, weights, biases, relu_flags)
    assert out1.shape == (8, OUT)
    assert jnp.allclose(out1, ref1, atol=1e-4, rtol=1e-4), "f32 path mismatch"

    # Case 2: multi-tile batch (2 parallel grid steps) with bf16 MXU operands.
    x2 = jax.random.normal(k[7], (40, D), jnp.float32)
    out2 = jax.block_until_ready(mlp_forward(x2, packed_bf16))
    ref2 = mlp_reference(x2, weights, biases, relu_flags)
    assert out2.shape == (40, OUT)
    assert jnp.allclose(out2, ref2, atol=3e-2, rtol=3e-2), "bf16 path mismatch"

    print("KERNEL_OK")
</pallas_src>

<mosaic_0001>
module attributes {stable_mosaic.version = 11 : i64} {
  func.func @_mlp_chain_kernel(%arg0: i32, %arg1: memref<8x16xf32, #tpu.memory_space<vmem>>, %arg2: memref<272x128xf32, #tpu.memory_space<vmem>>, %arg3: memref<8x128xf32, #tpu.memory_space<vmem>>, %arg4: memref<8x1xf32, #tpu.memory_space<vmem>>) attributes {dimension_semantics = [#tpu.dimension_semantics<parallel>], iteration_bounds = array<i64: 1>, scalar_prefetch = 0 : i64, scratch_operands = 0 : i64, tpu.core_type = #tpu.core_type<tc>, window_params = [{transform_indices = @transform_0, window_bounds = array<i64: 8, 16>}, {pipeline_mode = #tpu.pipeline_mode<synchronous>, transform_indices = @transform_1, window_bounds = array<i64: 272, 128>}, {pipeline_mode = #tpu.pipeline_mode<synchronous>, transform_indices = @transform_2, window_bounds = array<i64: 8, 128>}, {transform_indices = @transform_3, window_bounds = array<i64: 8, 1>}]} {
    %c0 = arith.constant 0 : index
    %c0_0 = arith.constant 0 : index
    %0 = vector.load %arg1[%c0, %c0_0] : memref<8x16xf32, #tpu.memory_space<vmem>>, vector<8x16xf32>
    %c0_1 = arith.constant 0 : index
    %c0_2 = arith.constant 0 : index
    %1 = vector.load %arg2[%c0_1, %c0_2] : memref<272x128xf32, #tpu.memory_space<vmem>>, vector<16x128xf32>
    %c0_3 = arith.constant 0 : index
    %c0_4 = arith.constant 0 : index
    %2 = vector.load %arg3[%c0_3, %c0_4] : memref<8x128xf32, #tpu.memory_space<vmem>>, vector<1x128xf32>
    %cst = arith.constant dense<0.000000e+00> : vector<8x128xf32>
    %3 = tpu.matmul %0, %1, %cst {dimension_numbers = #tpu.dot_dimension_numbers<[1], [0], [0], [1], [0, 0, 1, 1], [], []>} : vector<8x16xf32>, vector<16x128xf32>, vector<8x128xf32> -> vector<8x128xf32>
    %4 = vector.broadcast %2 : vector<1x128xf32> to vector<8x128xf32>
    %5 = arith.addf %3, %4 : vector<8x128xf32>
    %cst_5 = arith.constant 0.000000e+00 : f32
    %6 = vector.broadcast %cst_5 : f32 to vector<8x128xf32>
    %7 = arith.maximumf %5, %6 : vector<8x128xf32>
    %c16 = arith.constant 16 : index
    %c0_6 = arith.constant 0 : index
    %8 = vector.load %arg2[%c16, %c0_6] : memref<272x128xf32, #tpu.memory_space<vmem>>, vector<128x128xf32>
    %c1 = arith.constant 1 : index
    %c0_7 = arith.constant 0 : index
    %9 = vector.load %arg3[%c1, %c0_7] : memref<8x128xf32, #tpu.memory_space<vmem>>, vector<1x128xf32>
    %cst_8 = arith.constant dense<0.000000e+00> : vector<8x128xf32>
    %10 = tpu.matmul %7, %8, %cst_8 {dimension_numbers = #tpu.dot_dimension_numbers<[1], [0], [0], [1], [0, 0, 1, 1], [], []>} : vector<8x128xf32>, vector<128x128xf32>, vector<8x128xf32> -> vector<8x128xf32>
    %11 = vector.broadcast %9 : vector<1x128xf32> to vector<8x128xf32>
    %12 = arith.addf %10, %11 : vector<8x128xf32>
    %cst_9 = arith.constant 0.000000e+00 : f32
    %13 = vector.broadcast %cst_9 : f32 to vector<8x128xf32>
    %14 = arith.maximumf %12, %13 : vector<8x128xf32>
    %c144 = arith.constant 144 : index
    %c0_10 = arith.constant 0 : index
    %15 = vector.load %arg2[%c144, %c0_10] : memref<272x128xf32, #tpu.memory_space<vmem>>, vector<128x128xf32>
    %c2 = arith.constant 2 : index
    %c0_11 = arith.constant 0 : index
    %16 = vector.load %arg3[%c2, %c0_11] : memref<8x128xf32, #tpu.memory_space<vmem>>, vector<1x128xf32>
    %cst_12 = arith.constant dense<0.000000e+00> : vector<8x128xf32>
    %17 = tpu.matmul %14, %15, %cst_12 {dimension_numbers = #tpu.dot_dimension_numbers<[1], [0], [0], [1], [0, 0, 1, 1], [], []>} : vector<8x128xf32>, vector<128x128xf32>, vector<8x128xf32> -> vector<8x128xf32>
    %18 = vector.broadcast %16 : vector<1x128xf32> to vector<8x128xf32>
    %19 = arith.addf %17, %18 : vector<8x128xf32>
    %20 = vector.extract_strided_slice %19 {offsets = [0, 0], sizes = [8, 1], strides = [1, 1]} : vector<8x128xf32> to vector<8x1xf32>
    %c0_13 = arith.constant 0 : index
    %c0_14 = arith.constant 0 : index
    %21 = vector.load %arg4[%c0_13, %c0_14] : memref<8x1xf32, #tpu.memory_space<vmem>>, vector<8x1xf32>
    tpu.vector_store %arg4[%c0_13, %c0_14], %20 {strides = array<i32>} : memref<8x1xf32, #tpu.memory_space<vmem>>, vector<8x1xf32>,
    return
  }
  func.func @transform_0(%arg0: i32) -> (i32, i32) {
    %c0_i32 = arith.constant 0 : i32
    %c0_i32_0 = arith.constant 0 : i32
    return %arg0, %c0_i32 : i32, i32
  }
  func.func @transform_1(%arg0: i32) -> (i32, i32) {
    %c0_i32 = arith.constant 0 : i32
    %c0_i32_0 = arith.constant 0 : i32
    %c0_i32_1 = arith.constant 0 : i32
    return %c0_i32, %c0_i32_0 : i32, i32
  }
  func.func @transform_2(%arg0: i32) -> (i32, i32) {
    %c0_i32 = arith.constant 0 : i32
    %c0_i32_0 = arith.constant 0 : i32
    %c0_i32_1 = arith.constant 0 : i32
    return %c0_i32, %c0_i32_0 : i32, i32
  }
  func.func @transform_3(%arg0: i32) -> (i32, i32) {
    %c0_i32 = arith.constant 0 : i32
    %c0_i32_0 = arith.constant 0 : i32
    return %arg0, %c0_i32 : i32, i32
  }
}

module attributes {stable_mosaic.version = 11 : i64} {
  func.func @_mlp_chain_kernel(%arg0: i32, %arg1: memref<8x16xf32, #tpu.memory_space<vmem>>, %arg2: memref<272x128xf32, #tpu.memory_space<vmem>>, %arg3: memref<8x128xf32, #tpu.memory_space<vmem>>, %arg4: memref<8x1xf32, #tpu.memory_space<vmem>>) attributes {dimension_semantics = [#tpu.dimension_semantics<parallel>], iteration_bounds = array<i64: 1>, scalar_prefetch = 0 : i64, scratch_operands = 0 : i64, tpu.core_type = #tpu.core_type<tc>, window_params = [{transform_indices = @transform_0, window_bounds = array<i64: 8, 16>}, {pipeline_mode = #tpu.pipeline_mode<synchronous>, transform_indices = @transform_1, window_bounds = array<i64: 272, 128>}, {pipeline_mode = #tpu.pipeline_mode<synchronous>, transform_indices = @transform_2, window_bounds = array<i64: 8, 128>}, {transform_indices = @transform_3, window_bounds = array<i64: 8, 1>}]} {
    %c0 = arith.constant 0 : index
    %c0_0 = arith.constant 0 : index
    %0 = vector.load %arg1[%c0, %c0_0] : memref<8x16xf32, #tpu.memory_space<vmem>>, vector<8x16xf32>
    %c0_1 = arith.constant 0 : index
    %c0_2 = arith.constant 0 : index
    %1 = vector.load %arg2[%c0_1, %c0_2] : memref<272x128xf32, #tpu.memory_space<vmem>>, vector<16x128xf32>
    %c0_3 = arith.constant 0 : index
    %c0_4 = arith.constant 0 : index
    %2 = vector.load %arg3[%c0_3, %c0_4] : memref<8x128xf32, #tpu.memory_space<vmem>>, vector<1x128xf32>
    %cst = arith.constant dense<0.000000e+00> : vector<8x128xf32>
    %3 = tpu.matmul %0, %1, %cst {dimension_numbers = #tpu.dot_dimension_numbers<[1], [0], [0], [1], [0, 0, 1, 1], [], []>} : vector<8x16xf32>, vector<16x128xf32>, vector<8x128xf32> -> vector<8x128xf32>
    %4 = vector.broadcast %2 : vector<1x128xf32> to vector<8x128xf32>
    %5 = arith.addf %3, %4 : vector<8x128xf32>
    %cst_5 = arith.constant 0.000000e+00 : f32
    %6 = vector.broadcast %cst_5 : f32 to vector<8x128xf32>
    %7 = arith.maximumf %5, %6 : vector<8x128xf32>
    %c16 = arith.constant 16 : index
    %c0_6 = arith.constant 0 : index
    %8 = vector.load %arg2[%c16, %c0_6] : memref<272x128xf32, #tpu.memory_space<vmem>>, vector<128x128xf32>
    %c1 = arith.constant 1 : index
    %c0_7 = arith.constant 0 : index
    %9 = vector.load %arg3[%c1, %c0_7] : memref<8x128xf32, #tpu.memory_space<vmem>>, vector<1x128xf32>
    %cst_8 = arith.constant dense<0.000000e+00> : vector<8x128xf32>
    %10 = tpu.matmul %7, %8, %cst_8 {dimension_numbers = #tpu.dot_dimension_numbers<[1], [0], [0], [1], [0, 0, 1, 1], [], []>} : vector<8x128xf32>, vector<128x128xf32>, vector<8x128xf32> -> vector<8x128xf32>
    %11 = vector.broadcast %9 : vector<1x128xf32> to vector<8x128xf32>
    %12 = arith.addf %10, %11 : vector<8x128xf32>
    %cst_9 = arith.constant 0.000000e+00 : f32
    %13 = vector.broadcast %cst_9 : f32 to vector<8x128xf32>
    %14 = arith.maximumf %12, %13 : vector<8x128xf32>
    %c144 = arith.constant 144 : index
    %c0_10 = arith.constant 0 : index
    %15 = vector.load %arg2[%c144, %c0_10] : memref<272x128xf32, #tpu.memory_space<vmem>>, vector<128x128xf32>
    %c2 = arith.constant 2 : index
    %c0_11 = arith.constant 0 : index
    %16 = vector.load %arg3[%c2, %c0_11] : memref<8x128xf32, #tpu.memory_space<vmem>>, vector<1x128xf32>
    %cst_12 = arith.constant dense<0.000000e+00> : vector<8x128xf32>
    %17 = tpu.matmul %14, %15, %cst_12 {dimension_numbers = #tpu.dot_dimension_numbers<[1], [0], [0], [1], [0, 0, 1, 1], [], []>} : vector<8x128xf32>, vector<128x128xf32>, vector<8x128xf32> -> vector<8x128xf32>
    %18 = vector.broadcast %16 : vector<1x128xf32> to vector<8x128xf32>
    %19 = arith.addf %17, %18 : vector<8x128xf32>
    %20 = vector.extract_strided_slice %19 {offsets = [0, 0], sizes = [8, 1], strides = [1, 1]} : vector<8x128xf32> to vector<8x1xf32>
    %c0_13 = arith.constant 0 : index
    %c0_14 = arith.constant 0 : index
    %21 = vector.load %arg4[%c0_13, %c0_14] : memref<8x1xf32, #tpu.memory_space<vmem>>, vector<8x1xf32>
    tpu.vector_store %arg4[%c0_13, %c0_14], %20 {strides = array<i32>} : memref<8x1xf32, #tpu.memory_space<vmem>>, vector<8x1xf32>,
    return
  }
  func.func @transform_0(%arg0: i32) -> (i32, i32) {
    %c0_i32 = arith.constant 0 : i32
    %c0_i32_0 = arith.constant 0 : i32
    return %arg0, %c0_i32 : i32, i32
  }
  func.func @transform_1(%arg0: i32) -> (i32, i32) {
    %c0_i32 = arith.constant 0 : i32
    %c0_i32_0 = arith.constant 0 : i32
    %c0_i32_1 = arith.constant 0 : i32
    return %c0_i32, %c0_i32_0 : i32, i32
  }
  func.func @transform_2(%arg0: i32) -> (i32, i32) {
    %c0_i32 = arith.constant 0 : i32
    %c0_i32_0 = arith.constant 0 : i32
    %c0_i32_1 = arith.constant 0 : i32
    return %c0_i32, %c0_i32_0 : i32, i32
  }
  func.func @transform_3(%arg0: i32) -> (i32, i32) {
    %c0_i32 = arith.constant 0 : i32
    %c0_i32_0 = arith.constant 0 : i32
    return %arg0, %c0_i32 : i32, i32
  }
}

</mosaic_0001>

<llo_original>
// kernel: tpu_custom_call.1
$region0: #{tpu_custom_call.1}
  #allocation0 [shape = 'u32[]', space=smem, size = 0x4, offset = 0x4, fixed_abs, tag = 'smem constant byte address 0x4 - core index']
  #allocation1 [shape = 'u32[72,128]{1,0:T(1,128)}', space=vmem, size = 0x9000, scoped, tag = 'internal scratch']
  %s0 = inlined_call_operand.hbm [shape: f32[8,16], index: 0, kind: input, shape index: {}]
  %s1 = inlined_call_operand.hbm [shape: f32[272,128], index: 1, kind: input, shape index: {}]
  %s2 = inlined_call_operand.hbm [shape: f32[8,128], index: 2, kind: input, shape index: {}]
  %s3 = inlined_call_operand.vmem [shape: f32[8,1], index: 3, kind: output, shape index: {}]
  %s4 = sld [smem:[#allocation0]]
  $region34: #{tpu_custom_call.1} parent=0
    _
  %s6 = ssub.s32 1, %s4
  %s7 = scalar_select 0, %s6, %s4
  $region1: #{tpu_custom_call.1} parent=0
    #allocation2 [shape = 'u8[4096]{0}', space=vmem, size = 0x1000, scoped, tag = 'input window, operand 0, single buffered']
    #allocation3 [shape = 's32[1]{0}', space=sflag, size = 0x4, scoped, tag = 'scoped memory for tpu_custom_call.1']
    #allocation4 [shape = 'u8[139264]{0}', space=vmem, size = 0x22000, scoped, tag = 'input window, operand 1, single buffered']
    #allocation5 [shape = 's32[1]{0}', space=sflag, size = 0x4, scoped, tag = 'scoped memory for tpu_custom_call.1']
    #allocation6 [shape = 'u8[4096]{0}', space=vmem, size = 0x1000, scoped, tag = 'input window, operand 2, single buffered']
    %8 = vsyncpa [#allocation3], 0
    %9 = vsyncpa [#allocation5], 0
    // Predicated region
    $region2: #{tpu_custom_call.1} parent=1 // pred_check
      _
    $region3: #{tpu_custom_call.1} parent=1 // pred_check_branch
      %11 = sbr.rel (0) target = $region5
    $region4: #{tpu_custom_call.1} parent=1 // pred_region
      %13 = vsyncadd [#allocation3], 0
      %s15 = sshll.u32 %s0, 4
      %s16 = int_to_ptr.hbm [resolvable:$true] %s15
      %s17 = sshll.u32 [#allocation2], 4
      %s18 = int_to_ptr.vmem [resolvable:$true] %s17
      %20 = dma.hbm_to_vmem [thread:$0]  %s16, 128, %s18, [#allocation3]
    $region5: #{tpu_custom_call.1} parent=1 // pred_fallthru
      _
    // Predicated region
    $region6: #{tpu_custom_call.1} parent=1 // pred_check
      _
    $region7: #{tpu_custom_call.1} parent=1 // pred_check_branch
      %22 = sbr.rel (0) target = $region9
    $region8: #{tpu_custom_call.1} parent=1 // pred_region
      %24 = vsyncadd [#allocation5], 0
      %s25 = sshll.u32 %s1, 4
      %s26 = int_to_ptr.hbm [resolvable:$true] %s25
      %s27 = sshll.u32 [#allocation4], 4
      %s28 = int_to_ptr.vmem [resolvable:$true] %s27
      %33 = dma.hbm_to_vmem [thread:$0]  %s26, 4352, %s28, [#allocation5], 128, 128, 8
    $region9: #{tpu_custom_call.1} parent=1 // pred_fallthru
      _
    // Predicated region
    $region10: #{tpu_custom_call.1} parent=1 // pred_check
      _
    $region11: #{tpu_custom_call.1} parent=1 // pred_check_branch
      %35 = sbr.rel (0) target = $region13
    $region12: #{tpu_custom_call.1} parent=1 // pred_region
      %37 = vsyncadd [#allocation5], 0
      %s39 = sshll.u32 %s2, 4
      %s40 = int_to_ptr.hbm [resolvable:$true] %s39
      %s41 = sshll.u32 [#allocation6], 4
      %s42 = int_to_ptr.vmem [resolvable:$true] %s41
      %44 = dma.hbm_to_vmem [thread:$0]  %s40, 128, %s42, [#allocation5]
    $region13: #{tpu_custom_call.1} parent=1 // pred_fallthru
      _
    // Predicated region
    $region14: #{tpu_custom_call.1} parent=1 // pred_check
      _
    $region15: #{tpu_custom_call.1} parent=1 // pred_check_branch
      %46 = sbr.rel (0) target = $region17
    $region16: #{tpu_custom_call.1} parent=1 // pred_region
      %48 = dma.done [#allocation3], 128
    $region17: #{tpu_custom_call.1} parent=1 // pred_fallthru
      _
    // Predicated region
    $region18: #{tpu_custom_call.1} parent=1 // pred_check
      _
    $region19: #{tpu_custom_call.1} parent=1 // pred_check_branch
      %50 = sbr.rel (0) target = $region21
    $region20: #{tpu_custom_call.1} parent=1 // pred_region
      %52 = dma.done [#allocation5], 4352
    $region21: #{tpu_custom_call.1} parent=1 // pred_fallthru
      _
    // Predicated region
    $region22: #{tpu_custom_call.1} parent=1 // pred_check
      _
    $region23: #{tpu_custom_call.1} parent=1 // pred_check_branch
      %54 = sbr.rel (0) target = $region25
    $region24: #{tpu_custom_call.1} parent=1 // pred_region
      %56 = dma.done [#allocation5], 128
    $region25: #{tpu_custom_call.1} parent=1 // pred_fallthru
      _
    %v57 = vld [vmem:[#allocation2] sm:$0xff]
    %v58 = vld [vmem:[#allocation4] sm:$0xff]
    %v59 = vld [vmem:[#allocation4 + $0x8] sm:$0xff]
    %v60 = vld [vmem:[#allocation6] sm:$0x1]
    %v61 = vperm.slane %v60, 0
    %vm62 = vcmask 130048
    %v64 = vsel %vm62, %v57, 0
    %66 = vmatpush.msra.mxu0 0.0
    %67 = vmatpush.msra.mxu0 0.0
    %68 = vmatpush.msra.mxu0 0.0
    %69 = vmatpush.msra.mxu0 0.0
    %70 = vmatpush.msra.mxu0 0.0
    %71 = vmatpush.msra.mxu0 0.0
    %72 = vmatpush.msra.mxu0 0.0
    %73 = vmatpush.msra.mxu0 0.0
    %74 = vmatpush.msra.mxu0 0.0
    %75 = vmatpush.msra.mxu0 0.0
    %76 = vmatpush.msra.mxu0 0.0
    %77 = vmatpush.msra.mxu0 0.0
    %78 = vmatpush.msra.mxu0 0.0
    %79 = vmatpush.msra.mxu0 0.0
    %80 = vmatpush.msra.mxu0 %v59
    %81 = vmatpush.msra.mxu0 %v58
    %82 = vmatmul.f32.gmra.mxu0 %v64
    %v83 = vpop.f32.mrf.mxu0
    %v84 = vadd.f32 %v61, %v83
    %85 = vdwg.mxu0
    %v86 = vmax.f32 %v84, 0.0
    %v87 = vld [vmem:[#allocation4 + $0x10] sm:$0xff]
    %v88 = vld [vmem:[#allocation4 + $0x18] sm:$0xff]
    %v89 = vld [vmem:[#allocation4 + $0x20] sm:$0xff]
    %v90 = vld [vmem:[#allocation4 + $0x28] sm:$0xff]
    %v91 = vld [vmem:[#allocation4 + $0x30] sm:$0xff]
    %v92 = vld [vmem:[#allocation4 + $0x38] sm:$0xff]
    %v93 = vld [vmem:[#allocation4 + $0x40] sm:$0xff]
    %v94 = vld [vmem:[#allocation4 + $0x48] sm:$0xff]
    %v95 = vld [vmem:[#allocation4 + $0x50] sm:$0xff]
    %v96 = vld [vmem:[#allocation4 + $0x58] sm:$0xff]
    %v97 = vld [vmem:[#allocation4 + $0x60] sm:$0xff]
    %v98 = vld [vmem:[#allocation4 + $0x68] sm:$0xff]
    %v99 = vld [vmem:[#allocation4 + $0x70] sm:$0xff]
    %v100 = vld [vmem:[#allocation4 + $0x78] sm:$0xff]
    %v101 = vld [vmem:[#allocation4 + $0x80] sm:$0xff]
    %v102 = vld [vmem:[#allocation4 + $0x88] sm:$0xff]
    %v103 = vld [vmem:[#allocation6 + $0x1] sm:$0x1]
    %v104 = vperm.slane %v103, 0
    %105 = vmatpush.msra.mxu0 %v102
    %106 = vmatpush.msra.mxu0 %v101
    %107 = vmatpush.msra.mxu0 %v100
    %108 = vmatpush.msra.mxu0 %v99
    %109 = vmatpush.msra.mxu0 %v98
    %110 = vmatpush.msra.mxu0 %v97
    %111 = vmatpush.msra.mxu0 %v96
    %112 = vmatpush.msra.mxu0 %v95
    %113 = vmatpush.msra.mxu0 %v94
    %114 = vmatpush.msra.mxu0 %v93
    %115 = vmatpush.msra.mxu0 %v92
    %116 = vmatpush.msra.mxu0 %v91
    %117 = vmatpush.msra.mxu0 %v90
    %118 = vmatpush.msra.mxu0 %v89
    %119 = vmatpush.msra.mxu0 %v88
    %120 = vmatpush.msra.mxu0 %v87
    %121 = vmatmul.f32.gmra.mxu0 %v86
    %v122 = vpop.f32.mrf.mxu0
    %v123 = vadd.f32 %v104, %v122
    %124 = vdwg.mxu0
    %v125 = vmax.f32 %v123, 0.0
    %v126 = vld [vmem:[#allocation4 + $0x90] sm:$0xff]
    %v127 = vld [vmem:[#allocation4 + $0x98] sm:$0xff]
    %v128 = vld [vmem:[#allocation4 + $0xa0] sm:$0xff]
    %v129 = vld [vmem:[#allocation4 + $0xa8] sm:$0xff]
    %v130 = vld [vmem:[#allocation4 + $0xb0] sm:$0xff]
    %v131 = vld [vmem:[#allocation4 + $0xb8] sm:$0xff]
    %v132 = vld [vmem:[#allocation4 + $0xc0] sm:$0xff]
    %v133 = vld [vmem:[#allocation4 + $0xc8] sm:$0xff]
    %v134 = vld [vmem:[#allocation4 + $0xd0] sm:$0xff]
    %v135 = vld [vmem:[#allocation4 + $0xd8] sm:$0xff]
    %v136 = vld [vmem:[#allocation4 + $0xe0] sm:$0xff]
    %v137 = vld [vmem:[#allocation4 + $0xe8] sm:$0xff]
    %v138 = vld [vmem:[#allocation4 + $0xf0] sm:$0xff]
    %v139 = vld [vmem:[#allocation4 + $0xf8] sm:$0xff]
    %v140 = vld [vmem:[#allocation4 + $0x100] sm:$0xff]
    %v141 = vld [vmem:[#allocation4 + $0x108] sm:$0xff]
    %v142 = vld [vmem:[#allocation6 + $0x2] sm:$0x1]
    %v143 = vperm.slane %v142, 0
    %144 = vmatpush.msra.mxu0 %v141
    %145 = vmatpush.msra.mxu0 %v140
    %146 = vmatpush.msra.mxu0 %v139
    %147 = vmatpush.msra.mxu0 %v138
    %148 = vmatpush.msra.mxu0 %v137
    %149 = vmatpush.msra.mxu0 %v136
    %150 = vmatpush.msra.mxu0 %v135
    %151 = vmatpush.msra.mxu0 %v134
    %152 = vmatpush.msra.mxu0 %v133
    %153 = vmatpush.msra.mxu0 %v132
    %154 = vmatpush.msra.mxu0 %v131
    %155 = vmatpush.msra.mxu0 %v130
    %156 = vmatpush.msra.mxu0 %v129
    %157 = vmatpush.msra.mxu0 %v128
    %158 = vmatpush.msra.mxu0 %v127
    %159 = vmatpush.msra.mxu0 %v126
    %160 = vmatmul.f32.gmra.mxu0 %v125
    %v161 = vpop.f32.mrf.mxu0
    %v162 = vadd.f32 %v143, %v161
    %163 = vdwg.mxu0
    %vm164 = vcmask 7168
    %165 = vst.msk [vmem:[%s3] sm:$0xff] %vm164, %v162
    // Predicated region
    $region26: #{tpu_custom_call.1} parent=1 // pred_check
      _
    $region27: #{tpu_custom_call.1} parent=1 // pred_check_branch
      %167 = sbr.rel (0) target = $region29
    $region28: #{tpu_custom_call.1} parent=1 // pred_region
      _
    $region29: #{tpu_custom_call.1} parent=1 // pred_fallthru
      _
    // Predicated region
    $region30: #{tpu_custom_call.1} parent=1 // pred_check
      _
    $region31: #{tpu_custom_call.1} parent=1 // pred_check_branch
      %169 = sbr.rel (0) target = $region33
    $region32: #{tpu_custom_call.1} parent=1 // pred_region
      _
    $region33: #{tpu_custom_call.1} parent=1 // pred_fallthru
      _
    %170 = vsyncpa [#allocation3], 1
    %171 = vsyncpa [#allocation5], 1

// kernel: tpu_custom_call.1
$region0: #{tpu_custom_call.1}
  #allocation0 [shape = 'u32[]', space=smem, size = 0x4, offset = 0x4, fixed_abs, tag = 'smem constant byte address 0x4 - core index']
  #allocation1 [shape = 'u32[72,128]{1,0:T(1,128)}', space=vmem, size = 0x9000, scoped, tag = 'internal scratch']
  %s0 = inlined_call_operand.hbm [shape: f32[8,16], index: 0, kind: input, shape index: {}]
  %s1 = inlined_call_operand.hbm [shape: f32[272,128], index: 1, kind: input, shape index: {}]
  %s2 = inlined_call_operand.hbm [shape: f32[8,128], index: 2, kind: input, shape index: {}]
  %s3 = inlined_call_operand.vmem [shape: f32[8,1], index: 3, kind: output, shape index: {}]
  %s4 = sld [smem:[#allocation0]]
  $region34: #{tpu_custom_call.1} parent=0
    _
  %s6 = ssub.s32 1, %s4
  %s7 = scalar_select 0, %s6, %s4
  $region1: #{tpu_custom_call.1} parent=0
    #allocation2 [shape = 'u8[4096]{0}', space=vmem, size = 0x1000, scoped, tag = 'input window, operand 0, single buffered']
    #allocation3 [shape = 's32[1]{0}', space=sflag, size = 0x4, scoped, tag = 'scoped memory for tpu_custom_call.1']
    #allocation4 [shape = 'u8[139264]{0}', space=vmem, size = 0x22000, scoped, tag = 'input window, operand 1, single buffered']
    #allocation5 [shape = 's32[1]{0}', space=sflag, size = 0x4, scoped, tag = 'scoped memory for tpu_custom_call.1']
    #allocation6 [shape = 'u8[4096]{0}', space=vmem, size = 0x1000, scoped, tag = 'input window, operand 2, single buffered']
    %8 = vsyncpa [#allocation3], 0
    %9 = vsyncpa [#allocation5], 0
    // Predicated region
    $region2: #{tpu_custom_call.1} parent=1 // pred_check
      _
    $region3: #{tpu_custom_call.1} parent=1 // pred_check_branch
      %11 = sbr.rel (0) target = $region5
    $region4: #{tpu_custom_call.1} parent=1 // pred_region
      %13 = vsyncadd [#allocation3], 0
      %s15 = sshll.u32 %s0, 4
      %s16 = int_to_ptr.hbm [resolvable:$true] %s15
      %s17 = sshll.u32 [#allocation2], 4
      %s18 = int_to_ptr.vmem [resolvable:$true] %s17
      %20 = dma.hbm_to_vmem [thread:$0]  %s16, 128, %s18, [#allocation3]
    $region5: #{tpu_custom_call.1} parent=1 // pred_fallthru
      _
    // Predicated region
    $region6: #{tpu_custom_call.1} parent=1 // pred_check
      _
    $region7: #{tpu_custom_call.1} parent=1 // pred_check_branch
      %22 = sbr.rel (0) target = $region9
    $region8: #{tpu_custom_call.1} parent=1 // pred_region
      %24 = vsyncadd [#allocation5], 0
      %s25 = sshll.u32 %s1, 4
      %s26 = int_to_ptr.hbm [resolvable:$true] %s25
      %s27 = sshll.u32 [#allocation4], 4
      %s28 = int_to_ptr.vmem [resolvable:$true] %s27
      %33 = dma.hbm_to_vmem [thread:$0]  %s26, 4352, %s28, [#allocation5], 128, 128, 8
    $region9: #{tpu_custom_call.1} parent=1 // pred_fallthru
      _
    // Predicated region
    $region10: #{tpu_custom_call.1} parent=1 // pred_check
      _
    $region11: #{tpu_custom_call.1} parent=1 // pred_check_branch
      %35 = sbr.rel (0) target = $region13
    $region12: #{tpu_custom_call.1} parent=1 // pred_region
      %37 = vsyncadd [#allocation5], 0
      %s39 = sshll.u32 %s2, 4
      %s40 = int_to_ptr.hbm [resolvable:$true] %s39
      %s41 = sshll.u32 [#allocation6], 4
      %s42 = int_to_ptr.vmem [resolvable:$true] %s41
      %44 = dma.hbm_to_vmem [thread:$0]  %s40, 128, %s42, [#allocation5]
    $region13: #{tpu_custom_call.1} parent=1 // pred_fallthru
      _
    // Predicated region
    $region14: #{tpu_custom_call.1} parent=1 // pred_check
      _
    $region15: #{tpu_custom_call.1} parent=1 // pred_check_branch
      %46 = sbr.rel (0) target = $region17
    $region16: #{tpu_custom_call.1} parent=1 // pred_region
      %48 = dma.done [#allocation3], 128
    $region17: #{tpu_custom_call.1} parent=1 // pred_fallthru
      _
    // Predicated region
    $region18: #{tpu_custom_call.1} parent=1 // pred_check
      _
    $region19: #{tpu_custom_call.1} parent=1 // pred_check_branch
      %50 = sbr.rel (0) target = $region21
    $region20: #{tpu_custom_call.1} parent=1 // pred_region
      %52 = dma.done [#allocation5], 4352
    $region21: #{tpu_custom_call.1} parent=1 // pred_fallthru
      _
    // Predicated region
    $region22: #{tpu_custom_call.1} parent=1 // pred_check
      _
    $region23: #{tpu_custom_call.1} parent=1 // pred_check_branch
      %54 = sbr.rel (0) target = $region25
    $region24: #{tpu_custom_call.1} parent=1 // pred_region
      %56 = dma.done [#allocation5], 128
    $region25: #{tpu_custom_call.1} parent=1 // pred_fallthru
      _
    %v57 = vld [vmem:[#allocation2] sm:$0xff]
    %v58 = vld [vmem:[#allocation4] sm:$0xff]
    %v59 = vld [vmem:[#allocation4 + $0x8] sm:$0xff]
    %v60 = vld [vmem:[#allocation6] sm:$0x1]
    %v61 = vperm.slane %v60, 0
    %vm62 = vcmask 130048
    %v64 = vsel %vm62, %v57, 0
    %66 = vmatpush.msra.mxu0 0.0
    %67 = vmatpush.msra.mxu0 0.0
    %68 = vmatpush.msra.mxu0 0.0
    %69 = vmatpush.msra.mxu0 0.0
    %70 = vmatpush.msra.mxu0 0.0
    %71 = vmatpush.msra.mxu0 0.0
    %72 = vmatpush.msra.mxu0 0.0
    %73 = vmatpush.msra.mxu0 0.0
    %74 = vmatpush.msra.mxu0 0.0
    %75 = vmatpush.msra.mxu0 0.0
    %76 = vmatpush.msra.mxu0 0.0
    %77 = vmatpush.msra.mxu0 0.0
    %78 = vmatpush.msra.mxu0 0.0
    %79 = vmatpush.msra.mxu0 0.0
    %80 = vmatpush.msra.mxu0 %v59
    %81 = vmatpush.msra.mxu0 %v58
    %82 = vmatmul.f32.gmra.mxu0 %v64
    %v83 = vpop.f32.mrf.mxu0
    %v84 = vadd.f32 %v61, %v83
    %85 = vdwg.mxu0
    %v86 = vmax.f32 %v84, 0.0
    %v87 = vld [vmem:[#allocation4 + $0x10] sm:$0xff]
    %v88 = vld [vmem:[#allocation4 + $0x18] sm:$0xff]
    %v89 = vld [vmem:[#allocation4 + $0x20] sm:$0xff]
    %v90 = vld [vmem:[#allocation4 + $0x28] sm:$0xff]
    %v91 = vld [vmem:[#allocation4 + $0x30] sm:$0xff]
    %v92 = vld [vmem:[#allocation4 + $0x38] sm:$0xff]
    %v93 = vld [vmem:[#allocation4 + $0x40] sm:$0xff]
    %v94 = vld [vmem:[#allocation4 + $0x48] sm:$0xff]
    %v95 = vld [vmem:[#allocation4 + $0x50] sm:$0xff]
    %v96 = vld [vmem:[#allocation4 + $0x58] sm:$0xff]
    %v97 = vld [vmem:[#allocation4 + $0x60] sm:$0xff]
    %v98 = vld [vmem:[#allocation4 + $0x68] sm:$0xff]
    %v99 = vld [vmem:[#allocation4 + $0x70] sm:$0xff]
    %v100 = vld [vmem:[#allocation4 + $0x78] sm:$0xff]
    %v101 = vld [vmem:[#allocation4 + $0x80] sm:$0xff]
    %v102 = vld [vmem:[#allocation4 + $0x88] sm:$0xff]
    %v103 = vld [vmem:[#allocation6 + $0x1] sm:$0x1]
    %v104 = vperm.slane %v103, 0
    %105 = vmatpush.msra.mxu0 %v102
    %106 = vmatpush.msra.mxu0 %v101
    %107 = vmatpush.msra.mxu0 %v100
    %108 = vmatpush.msra.mxu0 %v99
    %109 = vmatpush.msra.mxu0 %v98
    %110 = vmatpush.msra.mxu0 %v97
    %111 = vmatpush.msra.mxu0 %v96
    %112 = vmatpush.msra.mxu0 %v95
    %113 = vmatpush.msra.mxu0 %v94
    %114 = vmatpush.msra.mxu0 %v93
    %115 = vmatpush.msra.mxu0 %v92
    %116 = vmatpush.msra.mxu0 %v91
    %117 = vmatpush.msra.mxu0 %v90
    %118 = vmatpush.msra.mxu0 %v89
    %119 = vmatpush.msra.mxu0 %v88
    %120 = vmatpush.msra.mxu0 %v87
    %121 = vmatmul.f32.gmra.mxu0 %v86
    %v122 = vpop.f32.mrf.mxu0
    %v123 = vadd.f32 %v104, %v122
    %124 = vdwg.mxu0
    %v125 = vmax.f32 %v123, 0.0
    %v126 = vld [vmem:[#allocation4 + $0x90] sm:$0xff]
    %v127 = vld [vmem:[#allocation4 + $0x98] sm:$0xff]
    %v128 = vld [vmem:[#allocation4 + $0xa0] sm:$0xff]
    %v129 = vld [vmem:[#allocation4 + $0xa8] sm:$0xff]
    %v130 = vld [vmem:[#allocation4 + $0xb0] sm:$0xff]
    %v131 = vld [vmem:[#allocation4 + $0xb8] sm:$0xff]
    %v132 = vld [vmem:[#allocation4 + $0xc0] sm:$0xff]
    %v133 = vld [vmem:[#allocation4 + $0xc8] sm:$0xff]
    %v134 = vld [vmem:[#allocation4 + $0xd0] sm:$0xff]
    %v135 = vld [vmem:[#allocation4 + $0xd8] sm:$0xff]
    %v136 = vld [vmem:[#allocation4 + $0xe0] sm:$0xff]
    %v137 = vld [vmem:[#allocation4 + $0xe8] sm:$0xff]
    %v138 = vld [vmem:[#allocation4 + $0xf0] sm:$0xff]
    %v139 = vld [vmem:[#allocation4 + $0xf8] sm:$0xff]
    %v140 = vld [vmem:[#allocation4 + $0x100] sm:$0xff]
    %v141 = vld [vmem:[#allocation4 + $0x108] sm:$0xff]
    %v142 = vld [vmem:[#allocation6 + $0x2] sm:$0x1]
    %v143 = vperm.slane %v142, 0
    %144 = vmatpush.msra.mxu0 %v141
    %145 = vmatpush.msra.mxu0 %v140
    %146 = vmatpush.msra.mxu0 %v139
    %147 = vmatpush.msra.mxu0 %v138
    %148 = vmatpush.msra.mxu0 %v137
    %149 = vmatpush.msra.mxu0 %v136
    %150 = vmatpush.msra.mxu0 %v135
    %151 = vmatpush.msra.mxu0 %v134
    %152 = vmatpush.msra.mxu0 %v133
    %153 = vmatpush.msra.mxu0 %v132
    %154 = vmatpush.msra.mxu0 %v131
    %155 = vmatpush.msra.mxu0 %v130
    %156 = vmatpush.msra.mxu0 %v129
    %157 = vmatpush.msra.mxu0 %v128
    %158 = vmatpush.msra.mxu0 %v127
    %159 = vmatpush.msra.mxu0 %v126
    %160 = vmatmul.f32.gmra.mxu0 %v125
    %v161 = vpop.f32.mrf.mxu0
    %v162 = vadd.f32 %v143, %v161
    %163 = vdwg.mxu0
    %vm164 = vcmask 7168
    %165 = vst.msk [vmem:[%s3] sm:$0xff] %vm164, %v162
    // Predicated region
    $region26: #{tpu_custom_call.1} parent=1 // pred_check
      _
    $region27: #{tpu_custom_call.1} parent=1 // pred_check_branch
      %167 = sbr.rel (0) target = $region29
    $region28: #{tpu_custom_call.1} parent=1 // pred_region
      _
    $region29: #{tpu_custom_call.1} parent=1 // pred_fallthru
      _
    // Predicated region
    $region30: #{tpu_custom_call.1} parent=1 // pred_check
      _
    $region31: #{tpu_custom_call.1} parent=1 // pred_check_branch
      %169 = sbr.rel (0) target = $region33
    $region32: #{tpu_custom_call.1} parent=1 // pred_region
      _
    $region33: #{tpu_custom_call.1} parent=1 // pred_fallthru
      _
    %170 = vsyncpa [#allocation3], 1
    %171 = vsyncpa [#allocation5], 1

</llo_original>
